<compile_context>
chip_gen: v6e
topology: v6e:2x2x1
jax: 0.10.0
libtpu: 0.0.40
codegen_flags: <defaults>
</compile_context>

<pallas_src>
import jax
import jax.numpy as jnp
from jax.experimental import pallas as pl
from jax.experimental.pallas import tpu as pltpu


def _gate_kernel(xe_ref, xl_ref, we_ref, wl_ref, bias_ref, out_ref):
    xe = xe_ref[...]                      # (TB, E)
    xl = xl_ref[...]                      # (TB, L)

    # Fused matmul: columns [:O_pad] are the g() pre-activation,
    # [O_pad:2*O_pad] the gate pre-activation.  f32 MXU accumulation.
    pre = (jnp.dot(xe, we_ref[...], preferred_element_type=jnp.float32)
           + jnp.dot(xl, wl_ref[...], preferred_element_type=jnp.float32)
           + bias_ref[...])               # (TB, 2*O_pad), f32

    o = out_ref.shape[-1]                 # true output width
    o_pad = we_ref.shape[-1] // 2         # lane-tile-aligned split point

    g_embedded = jnp.tanh(pre[:, :o])                       # EUP
    gate = jax.nn.sigmoid(pre[:, o_pad:o_pad + o])          # EUP

    xe_f32 = xe.astype(jnp.float32)
    out_ref[...] = (xe_f32 + gate * (g_embedded - xe_f32)).astype(out_ref.dtype)


def prepare_gate_params(params, compute_dtype=None):
    """Hoist per-call weight slicing / transposing / fusion / padding out of the hot path.

    params:
      w_g       : (O, E + L)   nn.Linear weight (out, in)
      b_g       : (O,)
      w_g1      : (O, E)       (E == O)
      w_g2      : (O, L)
      gate_bias : (O,)

    returns (we, wl, bias) with O_pad = round_up(O, 128):
      we   : (E, 2*O_pad)  = [ pad(Wg[:, :E].T) | pad(Wg1.T) ]
      wl   : (L, 2*O_pad)  = [ pad(Wg[:, E:].T) | pad(Wg2.T) ]
      bias : (1, 2*O_pad)  = [ pad(b_g) | pad(gate_bias) ]   (f32)

    If `compute_dtype` is given (e.g. bf16 activations), the weights are cast
    so the MXU runs a same-dtype matmul at full rate; bias stays f32.
    """
    w_g, b_g = params["w_g"], params["b_g"]
    w_g1, w_g2 = params["w_g1"], params["w_g2"]
    gate_bias = params["gate_bias"]

    O = w_g.shape[0]
    E = w_g1.shape[1]
    O_pad = ((O + 127) // 128) * 128
    dtype = compute_dtype if compute_dtype is not None else w_g.dtype

    def pad_cols(w):  # (rows, O) -> (rows, O_pad), zero padding
        return jnp.pad(w, ((0, 0), (0, O_pad - O)))

    we = jnp.concatenate([pad_cols(w_g[:, :E].T), pad_cols(w_g1.T)], axis=1).astype(dtype)
    wl = jnp.concatenate([pad_cols(w_g[:, E:].T), pad_cols(w_g2.T)], axis=1).astype(dtype)
    bias = jnp.concatenate(
        [jnp.pad(b_g, (0, O_pad - O)), jnp.pad(gate_bias, (0, O_pad - O))]
    ).astype(jnp.float32)
    return we, wl, bias.reshape(1, 2 * O_pad)


def gate_forward(x_ent, x_lit, we, wl, bias, *, batch_tile=4096):
    B, E = x_ent.shape
    Bl, L = x_lit.shape
    assert Bl == B
    two_opad = we.shape[1]
    O_pad = two_opad // 2
    O = E  # module invariant: x_ent feature dim == output_size
    assert we.shape == (E, two_opad) and wl.shape == (L, two_opad)
    assert bias.shape == (1, two_opad)
    assert O_pad >= O and O_pad % 128 == 0

    in_bytes = x_ent.dtype.itemsize

    # --- batch tile selection -------------------------------------------------
    # Big tiles amortize the fixed per-grid-step cost (DMA setup + bookkeeping).
    TB = min(batch_tile, B)
    # Keep >= 2 grid steps when the batch allows it so the "parallel" axis can
    # shard across both TensorCores on v7x (v5e/v6e are single-TC, no cost).
    if TB == B and B >= 16:
        TB = -(-B // 2)
    # VMEM budget: double-buffered in/out tiles + a few full-width f32
    # temporaries per row; stay well under the 32 MiB scoped cap.
    row_bytes = 2 * (E + L + O) * in_bytes + 4 * two_opad * 4
    vmem_cap_rows = max(8, (int((24 << 20) // row_bytes) // 8) * 8)
    TB = min(TB, vmem_cap_rows)
    if TB < B:
        TB = max(8, (TB // 8) * 8)  # sublane alignment when not the full batch dim

    grid = (pl.cdiv(B, TB),)

    return pl.pallas_call(
        _gate_kernel,
        out_shape=jax.ShapeDtypeStruct((B, O), x_ent.dtype),
        grid=grid,
        in_specs=[
            pl.BlockSpec((TB, E), lambda i: (i, 0)),        # x_ent tile (pipelined)
            pl.BlockSpec((TB, L), lambda i: (i, 0)),        # x_lit tile (pipelined)
            pl.BlockSpec((E, two_opad), lambda i: (0, 0)),  # fused weights: VMEM-resident
            pl.BlockSpec((L, two_opad), lambda i: (0, 0)),
            pl.BlockSpec((1, two_opad), lambda i: (0, 0)),  # fused bias
        ],
        out_specs=pl.BlockSpec((TB, O), lambda i: (i, 0)),
        compiler_params=pltpu.CompilerParams(
            dimension_semantics=("parallel",),      # megacore sharding on v7x
            vmem_limit_bytes=32 * 1024 * 1024,      # safe on v7x's 64 MiB VMEM
        ),
    )(x_ent, x_lit, we, wl, bias)


def _reference(x_ent, x_lit, params):
    x = jnp.concatenate([x_ent, x_lit], axis=-1)
    g_embedded = jnp.tanh(x @ params["w_g"].T + params["b_g"])
    gate = jax.nn.sigmoid(x_ent @ params["w_g1"].T
                          + x_lit @ params["w_g2"].T
                          + params["gate_bias"])
    return (1.0 - gate) * x_ent + gate * g_embedded


if __name__ == "__main__":
    # Small, module-consistent sizes.
    output_size = 32               # x_ent feature dim
    lit_size = 32                  # x_lit feature dim
    input_size = output_size + lit_size

    key = jax.random.PRNGKey(0)
    k = jax.random.split(key, 8)

    def uniform(kk, shape, fan_in):
        bound = 1.0 / jnp.sqrt(fan_in)
        return jax.random.uniform(kk, shape, jnp.float32, -bound, bound)

    # Deterministic, PyTorch-Linear-style init.
    params = {
        "w_g":       uniform(k[0], (output_size, input_size), input_size),
        "b_g":       uniform(k[1], (output_size,), input_size),
        "w_g1":      uniform(k[2], (output_size, output_size), output_size),
        "w_g2":      uniform(k[3], (output_size, lit_size), lit_size),
        "gate_bias": jnp.zeros((output_size,), jnp.float32),
    }

    # Weight fusion / transpose / 128-lane padding done ONCE, outside the hot path.
    we, wl, bias = prepare_gate_params(params)
    we, wl, bias = jax.device_put(we), jax.device_put(wl), jax.device_put(bias)

    fwd = jax.jit(gate_forward)

    # Case 1: single-block grid (B == TB).
    batch = 8
    x_ent = jax.random.normal(k[4], (batch, output_size), jnp.float32)
    x_lit = jax.random.normal(k[5], (batch, lit_size), jnp.float32)
    out = jax.block_until_ready(fwd(x_ent, x_lit, we, wl, bias))
    ref = _reference(x_ent, x_lit, params)
    assert out.shape == (batch, output_size)
    assert jnp.allclose(out, ref, atol=1e-5, rtol=1e-5), "mismatch vs reference (B=8)"

    # Case 2: multi-step grid with a padded last block (exercises tiling path).
    batch2 = 20
    x_ent2 = jax.random.normal(k[6], (batch2, output_size), jnp.float32)
    x_lit2 = jax.random.normal(k[7], (batch2, lit_size), jnp.float32)
    out2 = jax.block_until_ready(fwd(x_ent2, x_lit2, we, wl, bias))
    ref2 = _reference(x_ent2, x_lit2, params)
    assert out2.shape == (batch2, output_size)
    assert jnp.allclose(out2, ref2, atol=1e-5, rtol=1e-5), "mismatch vs reference (B=20)"

    print("KERNEL_OK")
</pallas_src>

<mosaic_0001>
module attributes {stable_mosaic.version = 11 : i64} {
  func.func @_gate_kernel(%arg0: i32, %arg1: memref<8x32xf32, #tpu.memory_space<vmem>>, %arg2: memref<8x32xf32, #tpu.memory_space<vmem>>, %arg3: memref<32x256xf32, #tpu.memory_space<vmem>>, %arg4: memref<32x256xf32, #tpu.memory_space<vmem>>, %arg5: memref<1x256xf32, #tpu.memory_space<vmem>>, %arg6: memref<8x32xf32, #tpu.memory_space<vmem>>) attributes {dimension_semantics = [#tpu.dimension_semantics<parallel>], iteration_bounds = array<i64: 1>, scalar_prefetch = 0 : i64, scratch_operands = 0 : i64, tpu.core_type = #tpu.core_type<tc>, window_params = [{transform_indices = @transform_0, window_bounds = array<i64: 8, 32>}, {transform_indices = @transform_1, window_bounds = array<i64: 8, 32>}, {pipeline_mode = #tpu.pipeline_mode<synchronous>, transform_indices = @transform_2, window_bounds = array<i64: 32, 256>}, {pipeline_mode = #tpu.pipeline_mode<synchronous>, transform_indices = @transform_3, window_bounds = array<i64: 32, 256>}, {pipeline_mode = #tpu.pipeline_mode<synchronous>, transform_indices = @transform_4, window_bounds = array<i64: 1, 256>}, {transform_indices = @transform_5, window_bounds = array<i64: 8, 32>}]} {
    %c0 = arith.constant 0 : index
    %c0_0 = arith.constant 0 : index
    %0 = vector.load %arg1[%c0, %c0_0] : memref<8x32xf32, #tpu.memory_space<vmem>>, vector<8x32xf32>
    %c0_1 = arith.constant 0 : index
    %c0_2 = arith.constant 0 : index
    %1 = vector.load %arg2[%c0_1, %c0_2] : memref<8x32xf32, #tpu.memory_space<vmem>>, vector<8x32xf32>
    %c0_3 = arith.constant 0 : index
    %c0_4 = arith.constant 0 : index
    %2 = vector.load %arg3[%c0_3, %c0_4] : memref<32x256xf32, #tpu.memory_space<vmem>>, vector<32x256xf32>
    %cst = arith.constant dense<0.000000e+00> : vector<8x256xf32>
    %3 = tpu.matmul %0, %2, %cst {dimension_numbers = #tpu.dot_dimension_numbers<[1], [0], [0], [1], [0, 0, 1, 1], [], []>} : vector<8x32xf32>, vector<32x256xf32>, vector<8x256xf32> -> vector<8x256xf32>
    %c0_5 = arith.constant 0 : index
    %c0_6 = arith.constant 0 : index
    %4 = vector.load %arg4[%c0_5, %c0_6] : memref<32x256xf32, #tpu.memory_space<vmem>>, vector<32x256xf32>
    %cst_7 = arith.constant dense<0.000000e+00> : vector<8x256xf32>
    %5 = tpu.matmul %1, %4, %cst_7 {dimension_numbers = #tpu.dot_dimension_numbers<[1], [0], [0], [1], [0, 0, 1, 1], [], []>} : vector<8x32xf32>, vector<32x256xf32>, vector<8x256xf32> -> vector<8x256xf32>
    %6 = arith.addf %3, %5 : vector<8x256xf32>
    %c0_8 = arith.constant 0 : index
    %c0_9 = arith.constant 0 : index
    %7 = vector.load %arg5[%c0_8, %c0_9] : memref<1x256xf32, #tpu.memory_space<vmem>>, vector<1x256xf32>
    %8 = vector.broadcast %7 : vector<1x256xf32> to vector<8x256xf32>
    %9 = arith.addf %6, %8 : vector<8x256xf32>
    %10 = vector.extract_strided_slice %9 {offsets = [0, 0], sizes = [8, 32], strides = [1, 1]} : vector<8x256xf32> to vector<8x32xf32>
    %11 = math.tanh %10 : vector<8x32xf32>
    %12 = vector.extract_strided_slice %9 {offsets = [0, 128], sizes = [8, 32], strides = [1, 1]} : vector<8x256xf32> to vector<8x32xf32>
    %13 = arith.negf %12 : vector<8x32xf32>
    %14 = math.exp %13 : vector<8x32xf32>
    %cst_10 = arith.constant 1.000000e+00 : f32
    %15 = vector.broadcast %cst_10 : f32 to vector<8x32xf32>
    %16 = arith.addf %15, %14 : vector<8x32xf32>
    %17 = arith.divf %15, %16 : vector<8x32xf32>
    %18 = arith.subf %11, %0 : vector<8x32xf32>
    %19 = arith.mulf %17, %18 : vector<8x32xf32>
    %20 = arith.addf %0, %19 : vector<8x32xf32>
    %c0_11 = arith.constant 0 : index
    %c0_12 = arith.constant 0 : index
    %21 = vector.load %arg6[%c0_11, %c0_12] : memref<8x32xf32, #tpu.memory_space<vmem>>, vector<8x32xf32>
    tpu.vector_store %arg6[%c0_11, %c0_12], %20 {strides = array<i32>} : memref<8x32xf32, #tpu.memory_space<vmem>>, vector<8x32xf32>,
    return
  }
  func.func @transform_0(%arg0: i32) -> (i32, i32) {
    %c0_i32 = arith.constant 0 : i32
    %c0_i32_0 = arith.constant 0 : i32
    return %arg0, %c0_i32 : i32, i32
  }
  func.func @transform_1(%arg0: i32) -> (i32, i32) {
    %c0_i32 = arith.constant 0 : i32
    %c0_i32_0 = arith.constant 0 : i32
    return %arg0, %c0_i32 : i32, i32
  }
  func.func @transform_2(%arg0: i32) -> (i32, i32) {
    %c0_i32 = arith.constant 0 : i32
    %c0_i32_0 = arith.constant 0 : i32
    %c0_i32_1 = arith.constant 0 : i32
    return %c0_i32, %c0_i32_0 : i32, i32
  }
  func.func @transform_3(%arg0: i32) -> (i32, i32) {
    %c0_i32 = arith.constant 0 : i32
    %c0_i32_0 = arith.constant 0 : i32
    %c0_i32_1 = arith.constant 0 : i32
    return %c0_i32, %c0_i32_0 : i32, i32
  }
  func.func @transform_4(%arg0: i32) -> (i32, i32) {
    %c0_i32 = arith.constant 0 : i32
    %c0_i32_0 = arith.constant 0 : i32
    %c0_i32_1 = arith.constant 0 : i32
    return %c0_i32, %c0_i32_0 : i32, i32
  }
  func.func @transform_5(%arg0: i32) -> (i32, i32) {
    %c0_i32 = arith.constant 0 : i32
    %c0_i32_0 = arith.constant 0 : i32
    return %arg0, %c0_i32 : i32, i32
  }
}

</mosaic_0001>

<llo_original>
// kernel: gate_forward.1
$region0: #{gate_forward.1}
  #allocation0 [shape = 'u32[]', space=smem, size = 0x4, offset = 0x4, fixed_abs, tag = 'smem constant byte address 0x4 - core index']
  #allocation1 [shape = 'u32[144,128]{1,0:T(1,128)}', space=vmem, size = 0x12000, scoped, tag = 'internal scratch']
  %s0 = inlined_call_operand.hbm [shape: f32[8,32], index: 0, kind: input, shape index: {}]
  %s1 = inlined_call_operand.hbm [shape: f32[8,32], index: 1, kind: input, shape index: {}]
  %s2 = inlined_call_operand.hbm [shape: f32[32,256], index: 2, kind: input, shape index: {}]
  %s3 = inlined_call_operand.hbm [shape: f32[32,256], index: 3, kind: input, shape index: {}]
  %s4 = inlined_call_operand.vmem [shape: f32[1,256], index: 4, kind: input, shape index: {}]
  %s5 = inlined_call_operand.hbm [shape: f32[8,32], index: 5, kind: output, shape index: {}]
  %s6 = sld [smem:[#allocation0]]
  $region46: #{gate_forward.1} parent=0
    _
  %s8 = ssub.s32 1, %s6
  %s9 = scalar_select 0, %s8, %s6
  $region1: #{gate_forward.1} parent=0
    #allocation2 [shape = 'u8[4096]{0}', space=vmem, size = 0x1000, scoped, tag = 'input window, operand 0, single buffered']
    #allocation3 [shape = 's32[1]{0}', space=sflag, size = 0x4, scoped, tag = 'scoped memory for gate_forward.1']
    #allocation4 [shape = 's32[1]{0}', space=sflag, size = 0x4, scoped, tag = 'scoped memory for gate_forward.1']
    #allocation5 [shape = 'u8[4096]{0}', space=vmem, size = 0x1000, scoped, tag = 'input window, operand 1, single buffered']
    #allocation6 [shape = 's32[1]{0}', space=sflag, size = 0x4, scoped, tag = 'scoped memory for gate_forward.1']
    #allocation7 [shape = 'u8[32768]{0}', space=vmem, size = 0x8000, scoped, tag = 'input window, operand 2, single buffered']
    #allocation8 [shape = 'u8[32768]{0}', space=vmem, size = 0x8000, scoped, tag = 'input window, operand 3, single buffered']
    #allocation9 [shape = 's32[1]{0}', space=sflag, size = 0x4, scoped, tag = 'scoped memory for gate_forward.1']
    #allocation10 [shape = 'u8[4096]{0}', space=vmem, size = 0x1000, scoped, tag = 'output window, operand 0, single buffered']
    %10 = vsyncpa [#allocation3], 0
    %11 = vsyncpa [#allocation6], 0
    %12 = vsyncpa [#allocation9], 0
    %13 = vsyncpa [#allocation4], 0
    // Predicated region
    $region2: #{gate_forward.1} parent=1 // pred_check
      _
    $region3: #{gate_forward.1} parent=1 // pred_check_branch
      %15 = sbr.rel (0) target = $region5
    $region4: #{gate_forward.1} parent=1 // pred_region
      %s17 = ssub.s32 128, 128
      %18 = vsyncadd [#allocation3], %s17
      %s20 = sshll.u32 [#allocation2], 4
      %s21 = int_to_ptr.vmem [resolvable:$true] %s20
      %23 = dma.hbm_to_vmem [thread:$0]  %s0, 128, %s21, [#allocation3]
    $region5: #{gate_forward.1} parent=1 // pred_fallthru
      _
    // Predicated region
    $region6: #{gate_forward.1} parent=1 // pred_check
      _
    $region7: #{gate_forward.1} parent=1 // pred_check_branch
      %25 = sbr.rel (0) target = $region9
    $region8: #{gate_forward.1} parent=1 // pred_region
      %s27 = ssub.s32 128, 128
      %28 = vsyncadd [#allocation6], %s27
      %s30 = sshll.u32 [#allocation5], 4
      %s31 = int_to_ptr.vmem [resolvable:$true] %s30
      %33 = dma.hbm_to_vmem [thread:$0]  %s1, 128, %s31, [#allocation6]
    $region9: #{gate_forward.1} parent=1 // pred_fallthru
      _
    // Predicated region
    $region10: #{gate_forward.1} parent=1 // pred_check
      _
    $region11: #{gate_forward.1} parent=1 // pred_check_branch
      %35 = sbr.rel (0) target = $region13
    $region12: #{gate_forward.1} parent=1 // pred_region
      %s37 = ssub.s32 1024, 1024
      %38 = vsyncadd [#allocation6], %s37
      %s39 = sshll.u32 [#allocation7], 4
      %s40 = int_to_ptr.vmem [resolvable:$true] %s39
      %45 = dma.hbm_to_vmem [thread:$0]  %s2, 1024, %s40, [#allocation6], 256, 256, 16
    $region13: #{gate_forward.1} parent=1 // pred_fallthru
      _
    // Predicated region
    $region14: #{gate_forward.1} parent=1 // pred_check
      _
    $region15: #{gate_forward.1} parent=1 // pred_check_branch
      %47 = sbr.rel (0) target = $region17
    $region16: #{gate_forward.1} parent=1 // pred_region
      %s49 = ssub.s32 1024, 1024
      %50 = vsyncadd [#allocation9], %s49
      %s51 = sshll.u32 [#allocation8], 4
      %s52 = int_to_ptr.vmem [resolvable:$true] %s51
      %57 = dma.hbm_to_vmem [thread:$0]  %s3, 1024, %s52, [#allocation9], 256, 256, 16
    $region17: #{gate_forward.1} parent=1 // pred_fallthru
      _
    // Predicated region
    $region18: #{gate_forward.1} parent=1 // pred_check
      _
    $region19: #{gate_forward.1} parent=1 // pred_check_branch
      %59 = sbr.rel (0) target = $region21
    $region20: #{gate_forward.1} parent=1 // pred_region
      _
    $region21: #{gate_forward.1} parent=1 // pred_fallthru
      _
    // Predicated region
    $region22: #{gate_forward.1} parent=1 // pred_check
      _
    $region23: #{gate_forward.1} parent=1 // pred_check_branch
      %61 = sbr.rel (0) target = $region25
    $region24: #{gate_forward.1} parent=1 // pred_region
      %62 = dma.done [#allocation3], 128
    $region25: #{gate_forward.1} parent=1 // pred_fallthru
      _
    // Predicated region
    $region26: #{gate_forward.1} parent=1 // pred_check
      _
    $region27: #{gate_forward.1} parent=1 // pred_check_branch
      %64 = sbr.rel (0) target = $region29
    $region28: #{gate_forward.1} parent=1 // pred_region
      %65 = dma.done [#allocation6], 128
    $region29: #{gate_forward.1} parent=1 // pred_fallthru
      _
    // Predicated region
    $region30: #{gate_forward.1} parent=1 // pred_check
      _
    $region31: #{gate_forward.1} parent=1 // pred_check_branch
      %67 = sbr.rel (0) target = $region33
    $region32: #{gate_forward.1} parent=1 // pred_region
      %68 = dma.done [#allocation6], 1024
    $region33: #{gate_forward.1} parent=1 // pred_fallthru
      _
    // Predicated region
    $region34: #{gate_forward.1} parent=1 // pred_check
      _
    $region35: #{gate_forward.1} parent=1 // pred_check_branch
      %70 = sbr.rel (0) target = $region37
    $region36: #{gate_forward.1} parent=1 // pred_region
      %71 = dma.done [#allocation9], 1024
    $region37: #{gate_forward.1} parent=1 // pred_fallthru
      _
    %v72 = vld [vmem:[#allocation2] sm:$0xff]
    %v73 = vld [vmem:[#allocation5] sm:$0xff]
    %v74 = vld [vmem:[#allocation7] sm:$0xff]
    %v75 = vld [vmem:[#allocation7 + $0x8] sm:$0xff]
    %v76 = vld [vmem:[#allocation7 + $0x10] sm:$0xff]
    %v77 = vld [vmem:[#allocation7 + $0x18] sm:$0xff]
    %v78 = vld [vmem:[#allocation7 + $0x20] sm:$0xff]
    %v79 = vld [vmem:[#allocation7 + $0x28] sm:$0xff]
    %v80 = vld [vmem:[#allocation7 + $0x30] sm:$0xff]
    %v81 = vld [vmem:[#allocation7 + $0x38] sm:$0xff]
    %v82 = vld [vmem:[#allocation8] sm:$0xff]
    %v83 = vld [vmem:[#allocation8 + $0x8] sm:$0xff]
    %v84 = vld [vmem:[#allocation8 + $0x10] sm:$0xff]
    %v85 = vld [vmem:[#allocation8 + $0x18] sm:$0xff]
    %v86 = vld [vmem:[#allocation8 + $0x20] sm:$0xff]
    %v87 = vld [vmem:[#allocation8 + $0x28] sm:$0xff]
    %v88 = vld [vmem:[#allocation8 + $0x30] sm:$0xff]
    %v89 = vld [vmem:[#allocation8 + $0x38] sm:$0xff]
    %vm90 = vcmask 261120
    %v92 = vsel %vm90, %v73, 0
    %94 = vmatprep.subr.mxu0 0.0
    %95 = vmatpush1.msra.mxu0 0.0
    %96 = vmatprep.subr.mxu0 0.0
    %97 = vmatpush1.msra.mxu0 0.0
    %98 = vmatprep.subr.mxu0 0.0
    %99 = vmatpush1.msra.mxu0 0.0
    %100 = vmatprep.subr.mxu0 0.0
    %101 = vmatpush1.msra.mxu0 0.0
    %102 = vmatprep.subr.mxu0 0.0
    %103 = vmatpush1.msra.mxu0 0.0
    %104 = vmatprep.subr.mxu0 0.0
    %105 = vmatpush1.msra.mxu0 0.0
    %106 = vmatprep.subr.mxu0 0.0
    %107 = vmatpush1.msra.mxu0 0.0
    %108 = vmatprep.subr.mxu0 0.0
    %109 = vmatpush1.msra.mxu0 0.0
    %110 = vmatprep.subr.mxu0 0.0
    %111 = vmatpush1.msra.mxu0 0.0
    %112 = vmatprep.subr.mxu0 0.0
    %113 = vmatpush1.msra.mxu0 0.0
    %114 = vmatprep.subr.mxu0 0.0
    %115 = vmatpush1.msra.mxu0 0.0
    %116 = vmatprep.subr.mxu0 0.0
    %117 = vmatpush1.msra.mxu0 0.0
    %118 = vmatprep.subr.mxu0 %v89
    %119 = vmatpush1.msra.mxu0 %v88
    %120 = vmatprep.subr.mxu0 %v87
    %121 = vmatpush1.msra.mxu0 %v86
    %122 = vmatprep.subr.mxu0 %v85
    %123 = vmatpush1.msra.mxu0 %v84
    %124 = vmatprep.subr.mxu0 %v83
    %125 = vmatpush1.msra.mxu0 %v82
    %126 = vmatprep.subr.mxu0 0.0
    %127 = vmatpush2.msra.mxu0 0.0
    %128 = vmatprep.subr.mxu0 0.0
    %129 = vmatpush2.msra.mxu0 0.0
    %130 = vmatprep.subr.mxu0 0.0
    %131 = vmatpush2.msra.mxu0 0.0
    %132 = vmatprep.subr.mxu0 0.0
    %133 = vmatpush2.msra.mxu0 0.0
    %134 = vmatprep.subr.mxu0 0.0
    %135 = vmatpush2.msra.mxu0 0.0
    %136 = vmatprep.subr.mxu0 0.0
    %137 = vmatpush2.msra.mxu0 0.0
    %138 = vmatprep.subr.mxu0 0.0
    %139 = vmatpush2.msra.mxu0 0.0
    %140 = vmatprep.subr.mxu0 0.0
    %141 = vmatpush2.msra.mxu0 0.0
    %142 = vmatprep.subr.mxu0 0.0
    %143 = vmatpush2.msra.mxu0 0.0
    %144 = vmatprep.subr.mxu0 0.0
    %145 = vmatpush2.msra.mxu0 0.0
    %146 = vmatprep.subr.mxu0 0.0
    %147 = vmatpush2.msra.mxu0 0.0
    %148 = vmatprep.subr.mxu0 0.0
    %149 = vmatpush2.msra.mxu0 0.0
    %150 = vmatprep.subr.mxu0 0.0
    %151 = vmatpush2.msra.mxu0 0.0
    %152 = vmatprep.subr.mxu0 0.0
    %153 = vmatpush2.msra.mxu0 0.0
    %154 = vmatprep.subr.mxu0 0.0
    %155 = vmatpush2.msra.mxu0 0.0
    %156 = vmatprep.subr.mxu0 0.0
    %157 = vmatpush2.msra.mxu0 0.0
    %158 = vmatprep.mubr.f32.mxu0 0.0
    %159 = vmatmul.mubr.f32.gmra.mxu0 %v92
    %v160 = vpop.f32.mrf.mxu0
    %v161 = vadd.f32 0.0, %v160
    %v162 = vpop.f32.mrf.mxu0
    %v163 = vadd.f32 0.0, %v162
    %164 = vdwg.mxu0
    %v166 = vsel %vm90, %v72, 0
    %168 = vmatprep.subr.mxu0 0.0
    %169 = vmatpush1.msra.mxu0 0.0
    %170 = vmatprep.subr.mxu0 0.0
    %171 = vmatpush1.msra.mxu0 0.0
    %172 = vmatprep.subr.mxu0 0.0
    %173 = vmatpush1.msra.mxu0 0.0
    %174 = vmatprep.subr.mxu0 0.0
    %175 = vmatpush1.msra.mxu0 0.0
    %176 = vmatprep.subr.mxu0 0.0
    %177 = vmatpush1.msra.mxu0 0.0
    %178 = vmatprep.subr.mxu0 0.0
    %179 = vmatpush1.msra.mxu0 0.0
    %180 = vmatprep.subr.mxu0 0.0
    %181 = vmatpush1.msra.mxu0 0.0
    %182 = vmatprep.subr.mxu0 0.0
    %183 = vmatpush1.msra.mxu0 0.0
    %184 = vmatprep.subr.mxu0 0.0
    %185 = vmatpush1.msra.mxu0 0.0
    %186 = vmatprep.subr.mxu0 0.0
    %187 = vmatpush1.msra.mxu0 0.0
    %188 = vmatprep.subr.mxu0 0.0
    %189 = vmatpush1.msra.mxu0 0.0
    %190 = vmatprep.subr.mxu0 0.0
    %191 = vmatpush1.msra.mxu0 0.0
    %192 = vmatprep.subr.mxu0 %v81
    %193 = vmatpush1.msra.mxu0 %v80
    %194 = vmatprep.subr.mxu0 %v79
    %195 = vmatpush1.msra.mxu0 %v78
    %196 = vmatprep.subr.mxu0 %v77
    %197 = vmatpush1.msra.mxu0 %v76
    %198 = vmatprep.subr.mxu0 %v75
    %199 = vmatpush1.msra.mxu0 %v74
    %200 = vmatprep.subr.mxu0 0.0
    %201 = vmatpush2.msra.mxu0 0.0
    %202 = vmatprep.subr.mxu0 0.0
    %203 = vmatpush2.msra.mxu0 0.0
    %204 = vmatprep.subr.mxu0 0.0
    %205 = vmatpush2.msra.mxu0 0.0
    %206 = vmatprep.subr.mxu0 0.0
    %207 = vmatpush2.msra.mxu0 0.0
    %208 = vmatprep.subr.mxu0 0.0
    %209 = vmatpush2.msra.mxu0 0.0
    %210 = vmatprep.subr.mxu0 0.0
    %211 = vmatpush2.msra.mxu0 0.0
    %212 = vmatprep.subr.mxu0 0.0
    %213 = vmatpush2.msra.mxu0 0.0
    %214 = vmatprep.subr.mxu0 0.0
    %215 = vmatpush2.msra.mxu0 0.0
    %216 = vmatprep.subr.mxu0 0.0
    %217 = vmatpush2.msra.mxu0 0.0
    %218 = vmatprep.subr.mxu0 0.0
    %219 = vmatpush2.msra.mxu0 0.0
    %220 = vmatprep.subr.mxu0 0.0
    %221 = vmatpush2.msra.mxu0 0.0
    %222 = vmatprep.subr.mxu0 0.0
    %223 = vmatpush2.msra.mxu0 0.0
    %224 = vmatprep.subr.mxu0 0.0
    %225 = vmatpush2.msra.mxu0 0.0
    %226 = vmatprep.subr.mxu0 0.0
    %227 = vmatpush2.msra.mxu0 0.0
    %228 = vmatprep.subr.mxu0 0.0
    %229 = vmatpush2.msra.mxu0 0.0
    %230 = vmatprep.subr.mxu0 0.0
    %231 = vmatpush2.msra.mxu0 0.0
    %232 = vmatprep.mubr.f32.mxu0 0.0
    %233 = vmatmul.mubr.f32.gmra.mxu0 %v166
    %v234 = vpop.f32.mrf.mxu0
    %v235 = vadd.f32 %v161, %v234
    %v236 = vpop.f32.mrf.mxu0
    %v237 = vadd.f32 %v163, %v236
    %238 = vdwg.mxu0
    %v239 = vld [vmem:[%s4] sm:$0x3]
    %v241 = vlaneseq
    %v242 = vshrl.u32 %v241, 7
    %v243 = vsub.s32 0, %v242
    %v244 = vrot.slane %v239, %v243
    %v245 = vlaneseq
    %v246 = vshrl.u32 %v245, 7
    %v247 = vsub.s32 1, %v246
    %v248 = vrot.slane %v239, %v247
    %v251 = vadd.f32 %v235, %v244
    %v252 = vadd.f32 %v237, %v248
    %v253 = vtanh.pop %v251
    %v254 = vxor.u32 %v252, 2147483648
    %v255 = vmul.f32 %v254, 1.442695
    %v256 = vpow.pop %v255
    %v257 = vadd.f32 %v256, 1.0
    %v258 = vrcp.pop %v257
    %v259 = vmul.f32 1.0, %v258
    %v260 = vsub.f32 %v253, %v72
    %v261 = vmul.f32 %v259, %v260
    %v262 = vadd.f32 %v72, %v261
    %263 = vst.msk [vmem:[#allocation10] sm:$0xff] %vm90, %v262
    // Predicated region
    $region38: #{gate_forward.1} parent=1 // pred_check
      _
    $region39: #{gate_forward.1} parent=1 // pred_check_branch
      %265 = sbr.rel (0) target = $region41
    $region40: #{gate_forward.1} parent=1 // pred_region
      %s267 = ssub.s32 128, 128
      %268 = vsyncadd [#allocation4], %s267
      %s270 = sshll.u32 [#allocation10], 4
      %s271 = int_to_ptr.vmem [resolvable:$true] %s270
      %273 = dma.vmem_to_hbm [thread:$0]  %s271, 128, %s5, [#allocation4]
    $region41: #{gate_forward.1} parent=1 // pred_fallthru
      _
    // Predicated region
    $region42: #{gate_forward.1} parent=1 // pred_check
      _
    $region43: #{gate_forward.1} parent=1 // pred_check_branch
      %275 = sbr.rel (0) target = $region45
    $region44: #{gate_forward.1} parent=1 // pred_region
      %276 = dma.done [#allocation4], 128
    $region45: #{gate_forward.1} parent=1 // pred_fallthru
      _
    %277 = vsyncpa [#allocation3], 1
    %278 = vsyncpa [#allocation6], 1
    %279 = vsyncpa [#allocation9], 1
    %280 = vsyncpa [#allocation4], 1

</llo_original>
